<compile_context>
chip_gen: v6e
topology: v6e:2x2x1
jax: 0.10.0
libtpu: 0.0.40
codegen_flags: <defaults>
</compile_context>

<pallas_src>
import functools

import jax
import jax.numpy as jnp
from jax.experimental import pallas as pl
from jax.experimental.pallas import tpu as pltpu


def sphere_loss_kernel(inv_lamb_ref, tgt_idx_ref, tgt_col_ref, tgt_row_ref,
                       x_ref, w_hbm_ref, loss_ref, wg_ref, dma_sem, *, gamma):
    B, F = x_ref.shape

    # ---- Gather the B target rows of W^T (C, F) straight from HBM. ----------
    # Only these columns of the full (B, C) logits feed the loss (dim=0 softmax
    # + gather at target[i]); each row fetch is a lane-dense (1, F) DMA.
    @pl.loop(0, B)
    def _start(i):
        t = tgt_idx_ref[i]
        pltpu.make_async_copy(
            w_hbm_ref.at[pl.ds(t, 1), :],
            wg_ref.at[pl.ds(i, 1), :],
            dma_sem.at[i],
        ).start()

    @pl.loop(0, B)
    def _wait(i):
        pltpu.make_async_copy(
            w_hbm_ref.at[pl.ds(0, 1), :],
            wg_ref.at[pl.ds(i, 1), :],
            dma_sem.at[i],
        ).wait()

    xf = x_ref[...].astype(jnp.float32)                # (B, F)
    wg = wg_ref[...].astype(jnp.float32)               # (B, F) gathered class rows
    inv_1p_lamb = inv_lamb_ref[0]                      # scalar 1/(1+lamb) from SMEM

    eps = 1e-30
    # Renorm folds away: both branches of w.renorm(2,1,1e-5).mul(1e5) give
    # w_col / ||w_col||.  Normalize the B gathered rows before the matmul.
    inv_wlen = jax.lax.rsqrt(
        jnp.maximum(jnp.sum(wg * wg, axis=1, keepdims=True), eps))    # (B, 1)
    wg_n = wg * inv_wlen

    sumsq_x = jnp.maximum(jnp.sum(xf * xf, axis=1, keepdims=True), eps)
    xlen = jnp.sqrt(sumsq_x)                            # (B, 1)
    inv_xlen = jax.lax.rsqrt(sumsq_x)                   # (B, 1)

    # g[r, i] = <x_r, w_hat_{target[i]}> = cos(theta_{r, target[i]}) * ||x_r||
    g = jax.lax.dot_general(xf, wg_n, (((1,), (1,)), ((), ())),
                            preferred_element_type=jnp.float32)       # (B, B)

    cos_scaled = jnp.clip(g, -xlen, xlen)               # cos_theta * xlen
    cos_n = cos_scaled * inv_xlen                       # cos_theta in [-1, 1]

    # m = 4 phi chain, on the (B, B) gathered block only (never (B, C)).
    c2 = cos_n * cos_n
    cos_m = 8.0 * c2 * c2 - 8.0 * c2 + 1.0              # cos(4*theta)
    inv_sqrt2 = 0.7071067811865476
    a = (cos_n <= inv_sqrt2).astype(jnp.float32)
    b = (cos_n <= 0.0).astype(jnp.float32)
    d = (cos_n <= -inv_sqrt2).astype(jnp.float32)
    k = a + b + d                                       # floor(4*acos(c)/pi)
    sign = 1.0 - 2.0 * (a - b + d)                      # (-1)^k
    phi_scaled = (sign * cos_m - 2.0 * k) * xlen        # phi_theta * xlen

    # Gathered column i is full-matrix column target[i]; the scatter_ mask hits
    # entry (r, i) whenever target[r] == target[i] (duplicate targets included).
    mask = (tgt_col_ref[...] == tgt_row_ref[...]).astype(jnp.float32)  # (B, B)
    output = cos_scaled - mask * ((cos_scaled - phi_scaled) * inv_1p_lamb)

    # log_softmax over dim=0 of each gathered column, then take the diagonal
    # entry (row i, column target[i]) -> lane-dense (1, B) logpt.
    mx = jnp.max(output, axis=0, keepdims=True)                        # (1, B)
    lse = jnp.log(jnp.sum(jnp.exp(output - mx), axis=0, keepdims=True)) + mx
    rid = jax.lax.broadcasted_iota(jnp.int32, (B, B), 0)
    cid = jax.lax.broadcasted_iota(jnp.int32, (B, B), 1)
    diag = jnp.sum(jnp.where(rid == cid, output, 0.0), axis=0, keepdims=True)
    logpt = diag - lse                                                 # (1, B)

    if gamma == 0:
        focal = 1.0
    else:
        focal = (1.0 - jnp.exp(logpt)) ** gamma
    loss_per = -1.0 * focal * logpt                                    # (1, B)
    loss_ref[...] = jnp.sum(loss_per, axis=1, keepdims=True) * (1.0 / B)


def sphere_loss(x, w, target, *, it=1, gamma=0,
                lambda_min=5.0, lambda_max=1500.0):
    """x: (B, feat_dim); w: (feat_dim, c_dim); target: (B,) int32."""
    B, F = x.shape
    lamb = max(lambda_min, lambda_max / (1.0 + 0.1 * it))
    # SMEM scalar so changing `it` between steps never recompiles the kernel.
    inv_1p_lamb = jnp.asarray([1.0 / (1.0 + lamb)], dtype=jnp.float32)
    tgt = target.astype(jnp.int32)
    # (C, F) row-major so each gathered class is one lane-dense row DMA.  In
    # production store the AngleLinear weight in this layout (nn.Linear
    # convention) and this transpose disappears.
    w_t = jnp.transpose(w)

    out = pl.pallas_call(
        functools.partial(sphere_loss_kernel, gamma=gamma),
        out_shape=jax.ShapeDtypeStruct((1, 1), jnp.float32),
        in_specs=[
            pl.BlockSpec(memory_space=pltpu.MemorySpace.SMEM),   # 1/(1+lamb)
            pl.BlockSpec(memory_space=pltpu.MemorySpace.SMEM),   # target idx (DMA)
            pl.BlockSpec(memory_space=pltpu.MemorySpace.VMEM),   # target (B, 1)
            pl.BlockSpec(memory_space=pltpu.MemorySpace.VMEM),   # target (1, B)
            pl.BlockSpec(memory_space=pltpu.MemorySpace.VMEM),   # x
            pl.BlockSpec(memory_space=pl.ANY),                   # W^T stays in HBM
        ],
        out_specs=pl.BlockSpec(memory_space=pltpu.MemorySpace.VMEM),
        scratch_shapes=[
            pltpu.VMEM((B, F), w.dtype),          # gathered target rows of W^T
            pltpu.SemaphoreType.DMA((B,)),
        ],
    )(inv_1p_lamb, tgt, tgt.reshape(B, 1), tgt.reshape(1, B), x, w_t)
    return out[0, 0]


def sphere_loss_ref(x, w, target, *, it=1, gamma=0,
                    lambda_min=5.0, lambda_max=1500.0):
    """Pure-JAX reference mirroring the PyTorch forward (m=4, phiflag=True)."""
    lamb = max(lambda_min, lambda_max / (1.0 + 0.1 * it))
    col_norm = jnp.sqrt(jnp.sum(w * w, axis=0, keepdims=True))
    ww = w * jnp.where(col_norm > 1e-5, 1e-5 / col_norm, 1.0) * 1e5
    wlen = jnp.sqrt(jnp.sum(ww * ww, axis=0, keepdims=True))
    xlen = jnp.sqrt(jnp.sum(x * x, axis=1, keepdims=True))
    c = jnp.clip(x @ ww / xlen / wlen, -1.0, 1.0)
    cmt = 8.0 * c ** 4 - 8.0 * c ** 2 + 1.0
    k = jnp.floor(4.0 * jnp.arccos(c) / jnp.pi)
    phi = jnp.where(jnp.mod(k, 2.0) == 0.0, 1.0, -1.0) * cmt - 2.0 * k
    cos_t, phi_t = c * xlen, phi * xlen
    onehot = jax.nn.one_hot(target, w.shape[1], dtype=jnp.float32)
    output = cos_t - onehot * (cos_t - phi_t) / (1.0 + lamb)
    logpt_full = jax.nn.log_softmax(output, axis=0)     # dim=0, as in the module
    logpt = jnp.sum(logpt_full * onehot, axis=1)
    pt = jnp.exp(logpt)
    focal = 1.0 if gamma == 0 else (1.0 - pt) ** gamma
    return jnp.mean(-1.0 * focal * logpt)


if __name__ == "__main__":
    B, FEAT_DIM, C_DIM = 8, 128, 256

    key = jax.random.PRNGKey(0)
    kx, kw, kt = jax.random.split(key, 3)
    x = jax.random.normal(kx, (B, FEAT_DIM), dtype=jnp.float32)
    # AngleLinear weight init: uniform(-1, 1); renorm is folded into the kernel.
    w = jax.random.uniform(kw, (FEAT_DIM, C_DIM), dtype=jnp.float32,
                           minval=-1.0, maxval=1.0)
    target = jax.random.randint(kt, (B,), 0, C_DIM, dtype=jnp.int32)

    loss = jax.block_until_ready(sphere_loss(x, w, target, it=1, gamma=0))
    ref = jax.block_until_ready(sphere_loss_ref(x, w, target, it=1, gamma=0))

    assert jnp.isfinite(loss), "loss is not finite"
    assert jnp.abs(loss - ref) < 1e-3, f"mismatch: {loss} vs {ref}"
    print("KERNEL_OK")
</pallas_src>

<mosaic_0001>
module attributes {stable_mosaic.version = 11 : i64} {
  func.func @sphere_loss_kernel(%arg0: memref<1xf32, #tpu.memory_space<smem>>, %arg1: memref<8xi32, #tpu.memory_space<smem>>, %arg2: memref<8x1xi32, #tpu.memory_space<vmem>>, %arg3: memref<1x8xi32, #tpu.memory_space<vmem>>, %arg4: memref<8x128xf32, #tpu.memory_space<vmem>>, %arg5: memref<256x128xf32, #tpu.memory_space<any>>, %arg6: memref<1x1xf32, #tpu.memory_space<vmem>>, %arg7: memref<8x128xf32, #tpu.memory_space<vmem>>, %arg8: memref<8x!tpu.dma_semaphore, #tpu.memory_space<semaphore_mem>>) attributes {dimension_semantics = [], scalar_prefetch = 0 : i64, scratch_operands = 2 : i64, tpu.core_type = #tpu.core_type<tc>} {
    %c0_i32 = arith.constant 0 : i32
    %c8_i32 = arith.constant 8 : i32
    %0 = arith.addi %c0_i32, %c8_i32 : i32
    %c1_i32 = arith.constant 1 : i32
    scf.for %arg9 = %c0_i32 to %0 step %c1_i32  : i32 {
      %c1_i32_36 = arith.constant 1 : i32
      %100 = arith.muli %arg9, %c1_i32_36 : i32
      %c0_i32_37 = arith.constant 0 : i32
      %101 = arith.addi %c0_i32_37, %100 : i32
      %102 = arith.index_cast %101 : i32 to index
      %103 = memref.load %arg1[%102] : memref<8xi32, #tpu.memory_space<smem>>
      %c0_i32_38 = arith.constant 0 : i32
      %104 = tpu.memref_slice %arg5[%103, %c0_i32_38] : memref<256x128xf32, #tpu.memory_space<any>> -> memref<1x128xf32, #tpu.memory_space<any>>
      %c0_i32_39 = arith.constant 0 : i32
      %105 = tpu.memref_slice %arg7[%101, %c0_i32_39] : memref<8x128xf32, #tpu.memory_space<vmem>> -> memref<1x128xf32, #tpu.memory_space<vmem>>
      %106 = tpu.memref_slice %arg8[%101] : memref<8x!tpu.dma_semaphore, #tpu.memory_space<semaphore_mem>> -> memref<1x!tpu.dma_semaphore, #tpu.memory_space<semaphore_mem>>
      %107 = tpu.memref_squeeze %106 : memref<1x!tpu.dma_semaphore, #tpu.memory_space<semaphore_mem>> -> memref<!tpu.dma_semaphore, #tpu.memory_space<semaphore_mem>>
      tpu.enqueue_dma source(%104 : memref<1x128xf32, #tpu.memory_space<any>>) target(%105 : memref<1x128xf32, #tpu.memory_space<vmem>>) target_semaphore(%107 : memref<!tpu.dma_semaphore, #tpu.memory_space<semaphore_mem>>)
    }
    %c8_i32_0 = arith.constant 8 : i32
    %c0_i32_1 = arith.constant 0 : i32
    %c8_i32_2 = arith.constant 8 : i32
    %1 = arith.addi %c0_i32_1, %c8_i32_2 : i32
    %c1_i32_3 = arith.constant 1 : i32
    scf.for %arg9 = %c0_i32_1 to %1 step %c1_i32_3  : i32 {
      %c1_i32_36 = arith.constant 1 : i32
      %100 = arith.muli %arg9, %c1_i32_36 : i32
      %c0_i32_37 = arith.constant 0 : i32
      %101 = arith.addi %c0_i32_37, %100 : i32
      %c0_i32_38 = arith.constant 0 : i32
      %c0_i32_39 = arith.constant 0 : i32
      %102 = tpu.memref_slice %arg5[%c0_i32_38, %c0_i32_39] : memref<256x128xf32, #tpu.memory_space<any>> -> memref<1x128xf32, #tpu.memory_space<any>>
      %c0_i32_40 = arith.constant 0 : i32
      %103 = tpu.memref_slice %arg7[%101, %c0_i32_40] : memref<8x128xf32, #tpu.memory_space<vmem>> -> memref<1x128xf32, #tpu.memory_space<vmem>>
      %104 = tpu.memref_slice %arg8[%101] : memref<8x!tpu.dma_semaphore, #tpu.memory_space<semaphore_mem>> -> memref<1x!tpu.dma_semaphore, #tpu.memory_space<semaphore_mem>>
      %105 = tpu.memref_squeeze %104 : memref<1x!tpu.dma_semaphore, #tpu.memory_space<semaphore_mem>> -> memref<!tpu.dma_semaphore, #tpu.memory_space<semaphore_mem>>
      tpu.wait_dma2 semaphore(%105 : memref<!tpu.dma_semaphore, #tpu.memory_space<semaphore_mem>>) src(%102 : memref<1x128xf32, #tpu.memory_space<any>>) dst(%103 : memref<1x128xf32, #tpu.memory_space<vmem>>)
    }
    %c8_i32_4 = arith.constant 8 : i32
    %c0 = arith.constant 0 : index
    %c0_5 = arith.constant 0 : index
    %2 = vector.load %arg4[%c0, %c0_5] : memref<8x128xf32, #tpu.memory_space<vmem>>, vector<8x128xf32>
    %c0_6 = arith.constant 0 : index
    %c0_7 = arith.constant 0 : index
    %3 = vector.load %arg7[%c0_6, %c0_7] : memref<8x128xf32, #tpu.memory_space<vmem>>, vector<8x128xf32>
    %c0_8 = arith.constant 0 : index
    %4 = memref.load %arg0[%c0_8] : memref<1xf32, #tpu.memory_space<smem>>
    %5 = arith.mulf %3, %3 : vector<8x128xf32>
    %cst = arith.constant dense<0.000000e+00> : vector<8xf32>
    %6 = vector.multi_reduction <add>, %5, %cst [1] : vector<8x128xf32> to vector<8xf32>
    %7 = vector.shape_cast %6 : vector<8xf32> to vector<8x1xf32>
    %cst_9 = arith.constant 1.000000e-30 : f32
    %8 = vector.broadcast %cst_9 : f32 to vector<8x1xf32>
    %9 = arith.maximumf %7, %8 : vector<8x1xf32>
    %10 = math.rsqrt %9 : vector<8x1xf32>
    %11 = vector.broadcast %10 : vector<8x1xf32> to vector<8x128xf32>
    %12 = arith.mulf %3, %11 : vector<8x128xf32>
    %13 = arith.mulf %2, %2 : vector<8x128xf32>
    %cst_10 = arith.constant dense<0.000000e+00> : vector<8xf32>
    %14 = vector.multi_reduction <add>, %13, %cst_10 [1] : vector<8x128xf32> to vector<8xf32>
    %15 = vector.shape_cast %14 : vector<8xf32> to vector<8x1xf32>
    %cst_11 = arith.constant 1.000000e-30 : f32
    %16 = vector.broadcast %cst_11 : f32 to vector<8x1xf32>
    %17 = arith.maximumf %15, %16 : vector<8x1xf32>
    %18 = math.sqrt %17 : vector<8x1xf32>
    %19 = math.rsqrt %17 : vector<8x1xf32>
    %cst_12 = arith.constant dense<0.000000e+00> : vector<8x8xf32>
    %20 = tpu.matmul %2, %12, %cst_12 {dimension_numbers = #tpu.dot_dimension_numbers<[1], [1], [0], [0], [0, 0, 1, 0], [], []>} : vector<8x128xf32>, vector<8x128xf32>, vector<8x8xf32> -> vector<8x8xf32>
    %cst_13 = arith.constant 0.000000e+00 : f32
    %21 = vector.broadcast %cst_13 : f32 to vector<8x1xf32>
    %22 = arith.subf %21, %18 : vector<8x1xf32>
    %23 = vector.broadcast %22 : vector<8x1xf32> to vector<8x8xf32>
    %24 = arith.maximumf %23, %20 : vector<8x8xf32>
    %25 = vector.broadcast %18 : vector<8x1xf32> to vector<8x8xf32>
    %26 = arith.minimumf %25, %24 : vector<8x8xf32>
    %27 = vector.broadcast %19 : vector<8x1xf32> to vector<8x8xf32>
    %28 = arith.mulf %26, %27 : vector<8x8xf32>
    %29 = arith.mulf %28, %28 : vector<8x8xf32>
    %cst_14 = arith.constant 8.000000e+00 : f32
    %30 = vector.broadcast %cst_14 : f32 to vector<8x8xf32>
    %31 = arith.mulf %30, %29 : vector<8x8xf32>
    %32 = arith.mulf %31, %29 : vector<8x8xf32>
    %cst_15 = arith.constant 8.000000e+00 : f32
    %33 = vector.broadcast %cst_15 : f32 to vector<8x8xf32>
    %34 = arith.mulf %33, %29 : vector<8x8xf32>
    %35 = arith.subf %32, %34 : vector<8x8xf32>
    %cst_16 = arith.constant 1.000000e+00 : f32
    %36 = vector.broadcast %cst_16 : f32 to vector<8x8xf32>
    %37 = arith.addf %35, %36 : vector<8x8xf32>
    %cst_17 = arith.constant 0.707106769 : f32
    %38 = vector.broadcast %cst_17 : f32 to vector<8x8xf32>
    %39 = arith.cmpf ole, %28, %38 : vector<8x8xf32>
    %40 = arith.extui %39 : vector<8x8xi1> to vector<8x8xi32>
    %41 = arith.sitofp %40 : vector<8x8xi32> to vector<8x8xf32>
    %cst_18 = arith.constant 0.000000e+00 : f32
    %42 = vector.broadcast %cst_18 : f32 to vector<8x8xf32>
    %43 = arith.cmpf ole, %28, %42 : vector<8x8xf32>
    %44 = arith.extui %43 : vector<8x8xi1> to vector<8x8xi32>
    %45 = arith.sitofp %44 : vector<8x8xi32> to vector<8x8xf32>
    %cst_19 = arith.constant -0.707106769 : f32
    %46 = vector.broadcast %cst_19 : f32 to vector<8x8xf32>
    %47 = arith.cmpf ole, %28, %46 : vector<8x8xf32>
    %48 = arith.extui %47 : vector<8x8xi1> to vector<8x8xi32>
    %49 = arith.sitofp %48 : vector<8x8xi32> to vector<8x8xf32>
    %50 = arith.addf %41, %45 : vector<8x8xf32>
    %51 = arith.addf %50, %49 : vector<8x8xf32>
    %52 = arith.subf %41, %45 : vector<8x8xf32>
    %53 = arith.addf %52, %49 : vector<8x8xf32>
    %cst_20 = arith.constant 2.000000e+00 : f32
    %54 = vector.broadcast %cst_20 : f32 to vector<8x8xf32>
    %55 = arith.mulf %54, %53 : vector<8x8xf32>
    %cst_21 = arith.constant 1.000000e+00 : f32
    %56 = vector.broadcast %cst_21 : f32 to vector<8x8xf32>
    %57 = arith.subf %56, %55 : vector<8x8xf32>
    %58 = arith.mulf %57, %37 : vector<8x8xf32>
    %cst_22 = arith.constant 2.000000e+00 : f32
    %59 = vector.broadcast %cst_22 : f32 to vector<8x8xf32>
    %60 = arith.mulf %59, %51 : vector<8x8xf32>
    %61 = arith.subf %58, %60 : vector<8x8xf32>
    %62 = vector.broadcast %18 : vector<8x1xf32> to vector<8x8xf32>
    %63 = arith.mulf %61, %62 : vector<8x8xf32>
    %c0_23 = arith.constant 0 : index
    %c0_24 = arith.constant 0 : index
    %64 = vector.load %arg2[%c0_23, %c0_24] : memref<8x1xi32, #tpu.memory_space<vmem>>, vector<8x1xi32>
    %c0_25 = arith.constant 0 : index
    %c0_26 = arith.constant 0 : index
    %65 = vector.load %arg3[%c0_25, %c0_26] : memref<1x8xi32, #tpu.memory_space<vmem>>, vector<1x8xi32>
    %66 = vector.broadcast %64 : vector<8x1xi32> to vector<8x8xi32>
    %67 = vector.broadcast %65 : vector<1x8xi32> to vector<8x8xi32>
    %68 = arith.cmpi eq, %66, %67 : vector<8x8xi32>
    %69 = arith.extui %68 : vector<8x8xi1> to vector<8x8xi32>
    %70 = arith.sitofp %69 : vector<8x8xi32> to vector<8x8xf32>
    %71 = arith.subf %26, %63 : vector<8x8xf32>
    %72 = vector.broadcast %4 : f32 to vector<8x8xf32>
    %73 = arith.mulf %71, %72 : vector<8x8xf32>
    %74 = arith.mulf %70, %73 : vector<8x8xf32>
    %75 = arith.subf %26, %74 : vector<8x8xf32>
    %cst_27 = arith.constant dense<0xFF800000> : vector<8xf32>
    %76 = vector.multi_reduction <maximumf>, %75, %cst_27 [0] : vector<8x8xf32> to vector<8xf32>
    %77 = vector.shape_cast %76 : vector<8xf32> to vector<1x8xf32>
    %78 = vector.broadcast %77 : vector<1x8xf32> to vector<8x8xf32>
    %79 = arith.subf %75, %78 : vector<8x8xf32>
    %80 = math.exp %79 : vector<8x8xf32>
    %cst_28 = arith.constant dense<0.000000e+00> : vector<8xf32>
    %81 = vector.multi_reduction <add>, %80, %cst_28 [0] : vector<8x8xf32> to vector<8xf32>
    %82 = vector.shape_cast %81 : vector<8xf32> to vector<1x8xf32>
    %83 = math.log %82 : vector<1x8xf32>
    %84 = arith.addf %83, %77 : vector<1x8xf32>
    %85 = tpu.iota {dimensions = array<i32: 0>} : vector<8x8xi32>
    %86 = tpu.iota {dimensions = array<i32: 1>} : vector<8x8xi32>
    %87 = arith.cmpi eq, %85, %86 : vector<8x8xi32>
    %cst_29 = arith.constant 0.000000e+00 : f32
    %88 = vector.broadcast %cst_29 : f32 to vector<8x8xf32>
    %89 = arith.select %87, %75, %88 : vector<8x8xi1>, vector<8x8xf32>
    %cst_30 = arith.constant dense<0.000000e+00> : vector<8xf32>
    %90 = vector.multi_reduction <add>, %89, %cst_30 [0] : vector<8x8xf32> to vector<8xf32>
    %91 = vector.shape_cast %90 : vector<8xf32> to vector<1x8xf32>
    %92 = arith.subf %91, %84 : vector<1x8xf32>
    %cst_31 = arith.constant -1.000000e+00 : f32
    %93 = vector.broadcast %cst_31 : f32 to vector<1x8xf32>
    %94 = arith.mulf %93, %92 : vector<1x8xf32>
    %cst_32 = arith.constant dense<0.000000e+00> : vector<1xf32>
    %95 = vector.multi_reduction <add>, %94, %cst_32 [1] : vector<1x8xf32> to vector<1xf32>
    %96 = vector.shape_cast %95 : vector<1xf32> to vector<1x1xf32>
    %cst_33 = arith.constant 1.250000e-01 : f32
    %97 = vector.broadcast %cst_33 : f32 to vector<1x1xf32>
    %98 = arith.mulf %96, %97 : vector<1x1xf32>
    %c0_34 = arith.constant 0 : index
    %c0_35 = arith.constant 0 : index
    %99 = vector.load %arg6[%c0_34, %c0_35] : memref<1x1xf32, #tpu.memory_space<vmem>>, vector<1x1xf32>
    tpu.vector_store %arg6[%c0_34, %c0_35], %98 {strides = array<i32>} : memref<1x1xf32, #tpu.memory_space<vmem>>, vector<1x1xf32>,
    return
  }
}

</mosaic_0001>

<llo_original>
// kernel: tpu_custom_call.1
$region0: #{tpu_custom_call.1}
  #allocation0 [shape = 'u32[]', space=smem, size = 0x4, offset = 0x4, fixed_abs, tag = 'smem constant byte address 0x4 - core index']
  #allocation1 [shape = 'u32[144,128]{1,0:T(1,128)}', space=vmem, size = 0x12000, scoped, tag = 'internal scratch']
  #allocation2 [shape = 'f32[8,128]{1,0:T(8,128)}', space=vmem, size = 0x1000, scoped, tag = 'scratch operand']
  #allocation3 [shape = 's32[8]{0}', space=sflag, size = 0x20, scoped, tag = 'scratch operand']
  #allocation4 [shape = 'f32[1]{0:T(128)S(6)}', space=smem, size = 0x200, scoped, tag = 'scoped memory for tpu_custom_call.1']
  #allocation9 [shape = 's32[]', space=sflag, size = 0x4, offset = 0, fixed_abs, tag = 'sflag constant byte address 0x0 - dummy sync flag']
  #allocation10 [shape = 's32[]', space=sflag, size = 0x4, offset = 0, fixed_abs, tag = 'sflag constant byte address 0x0 - dummy sync flag']
  #allocation11 [shape = 'u32[]', space=smem, size = 0x4, offset = 0x44, fixed_abs, tag = 'smem constant byte address 0x44 - assertion arg 0']
  #allocation12 [shape = 'u32[]', space=smem, size = 0x4, offset = 0x48, fixed_abs, tag = 'smem constant byte address 0x48 - assertion arg 1']
  %s0 = inlined_call_operand.<no memory space> [shape: f32[1], index: 0, kind: input, shape index: {}]
  %s1 = inlined_call_operand.vmem [shape: s32[8], index: 1, kind: input, shape index: {}]
  %s2 = inlined_call_operand.vmem [shape: s32[8,1], index: 2, kind: input, shape index: {}]
  %s3 = inlined_call_operand.vmem [shape: s32[1,8], index: 3, kind: input, shape index: {}]
  %s4 = inlined_call_operand.vmem [shape: f32[8,128], index: 4, kind: input, shape index: {}]
  %s5 = inlined_call_operand.hbm [shape: f32[256,128], index: 5, kind: input, shape index: {}]
  %s6 = inlined_call_operand.hbm [shape: f32[1,1], index: 6, kind: output, shape index: {}]
  %s7 = sld [smem:[#allocation0]]
  $region52: #{tpu_custom_call.1} parent=0
    _
  %s9 = ssub.s32 1, %s7
  %s10 = scalar_select 0, %s9, %s7
  %11 = sst [smem:[#allocation4]] %s0
  $region1: #{tpu_custom_call.1} parent=0
    #allocation5 [shape = 'u8[512]{0}', space=smem, size = 0x200, scoped, tag = 'input window, operand 1, single buffered']
    #allocation6 [shape = 's32[1]{0}', space=sflag, size = 0x4, scoped, tag = 'scoped memory for tpu_custom_call.1']
    #allocation7 [shape = 's32[1]{0}', space=sflag, size = 0x4, scoped, tag = 'scoped memory for tpu_custom_call.1']
    #allocation8 [shape = 'u8[512]{0}', space=vmem, size = 0x400, scoped, tag = 'output window, operand 0, single buffered']
    %12 = vsyncpa [#allocation7], 0
    %13 = vsyncpa [#allocation6], 0
    // Predicated region
    $region2: #{tpu_custom_call.1} parent=1 // pred_check
      _
    $region3: #{tpu_custom_call.1} parent=1 // pred_check_branch
      %15 = sbr.rel (0) target = $region5
    $region4: #{tpu_custom_call.1} parent=1 // pred_region
      _
    $region5: #{tpu_custom_call.1} parent=1 // pred_fallthru
      _
    // Predicated region
    $region6: #{tpu_custom_call.1} parent=1 // pred_check
      _
    $region7: #{tpu_custom_call.1} parent=1 // pred_check_branch
      %17 = sbr.rel (0) target = $region9
    $region8: #{tpu_custom_call.1} parent=1 // pred_region
      %s19 = ssub.s32 16, 16
      %20 = vsyncadd [#allocation7], %s19
      %s22 = sshll.u32 %s1, 4
      %s23 = int_to_ptr.vmem [resolvable:$true] %s22
      %25 = dma.vmem_to_smem %s23, 16, [#allocation5], [#allocation7]
    $region9: #{tpu_custom_call.1} parent=1 // pred_fallthru
      _
    // Predicated region
    $region10: #{tpu_custom_call.1} parent=1 // pred_check
      _
    $region11: #{tpu_custom_call.1} parent=1 // pred_check_branch
      %27 = sbr.rel (0) target = $region13
    $region12: #{tpu_custom_call.1} parent=1 // pred_region
      _
    $region13: #{tpu_custom_call.1} parent=1 // pred_fallthru
      _
    // Predicated region
    $region14: #{tpu_custom_call.1} parent=1 // pred_check
      _
    $region15: #{tpu_custom_call.1} parent=1 // pred_check_branch
      %29 = sbr.rel (0) target = $region17
    $region16: #{tpu_custom_call.1} parent=1 // pred_region
      _
    $region17: #{tpu_custom_call.1} parent=1 // pred_fallthru
      _
    // Predicated region
    $region18: #{tpu_custom_call.1} parent=1 // pred_check
      _
    $region19: #{tpu_custom_call.1} parent=1 // pred_check_branch
      %31 = sbr.rel (0) target = $region21
    $region20: #{tpu_custom_call.1} parent=1 // pred_region
      _
    $region21: #{tpu_custom_call.1} parent=1 // pred_fallthru
      _
    // Predicated region
    $region22: #{tpu_custom_call.1} parent=1 // pred_check
      _
    $region23: #{tpu_custom_call.1} parent=1 // pred_check_branch
      %33 = sbr.rel (0) target = $region25
    $region24: #{tpu_custom_call.1} parent=1 // pred_region
      %34 = dma.done [#allocation7], 16
    $region25: #{tpu_custom_call.1} parent=1 // pred_fallthru
      _
    %35 = sfence
    loop: start=0, step=1, limit=8
    $region26: #{tpu_custom_call.1} parent=1 // loop_pre_header
      _
    $region27: #{tpu_custom_call.1} parent=1 // loop_header
      %s37 = sphi 0, %s41
      %p38 = scmp.ge.s32.totalorder %s37, 8
    $region28: #{tpu_custom_call.1} parent=1 // loop_header_branch
      %40 = sbr.rel (%p38) target = $region32
    $region29: #{tpu_custom_call.1} parent=1 // loop_body
      %s42 = sld [smem:[#allocation5 + %s37]]
      %s43 = smul.addr %s42, 16
      %s44 = scalar_lea.hbm %s5, %s43
      %s45 = scalar_lea.vmem [#allocation2], %s37
      %s46 = scalar_lea.sflag [#allocation3], %s37
      // Predicated region
      $region33: #{tpu_custom_call.1} parent=29 // pred_check
        _
      $region34: #{tpu_custom_call.1} parent=29 // pred_check_branch
        %48 = sbr.rel target = $region36
      $region35: #{tpu_custom_call.1} parent=29 // pred_region
        %49 = sst [smem:[#allocation11]] [#allocation10]
        %50 = sst [smem:[#allocation12]] [#allocation9]
      $region36: #{tpu_custom_call.1} parent=29 // pred_fallthru
        _
      %52 = shalt.err (0)
      %s54 = sshll.u32 %s45, 4
      %s55 = int_to_ptr.vmem [resolvable:$true] %s54
      %57 = dma.hbm_to_vmem [thread:$0]  %s44, 16, %s55, %s46
    $region30: #{tpu_custom_call.1} parent=1 // loop_footer
      %s41 = sadd.s32 1, %s37
    $region31: #{tpu_custom_call.1} parent=1 // loop_footer_branch
      %36 = sbr.rel target = $region27
    $region32: #{tpu_custom_call.1} parent=1 // loop_exit
      _
    loop: start=0, step=1, limit=8
    $region37: #{tpu_custom_call.1} parent=1 // loop_pre_header
      _
    $region38: #{tpu_custom_call.1} parent=1 // loop_header
      %s59 = sphi 0, %s63
      %p60 = scmp.ge.s32.totalorder %s59, 8
    $region39: #{tpu_custom_call.1} parent=1 // loop_header_branch
      %62 = sbr.rel (%p60) target = $region43
    $region40: #{tpu_custom_call.1} parent=1 // loop_body
      %s64 = scalar_lea.sflag [#allocation3], %s59
      %s65 = smul.u32 1, 1
      %s66 = sshll.u32 %s65, 4
      %67 = dma.done %s64, %s66
    $region41: #{tpu_custom_call.1} parent=1 // loop_footer
      %s63 = sadd.s32 1, %s59
    $region42: #{tpu_custom_call.1} parent=1 // loop_footer_branch
      %58 = sbr.rel target = $region38
    $region43: #{tpu_custom_call.1} parent=1 // loop_exit
      _
    %v68 = vld [vmem:[%s4] sm:$0xff]
    %v69 = vld [vmem:[#allocation2] sm:$0xff]
    %s70 = sld [smem:[#allocation4]]
    %v71 = vmul.f32 %v69, %v69
    %72 = vadd.xlane.f32.xlu0 %v71
    %v73 = vpop.xlane.xlu0 %72
    %v74 = vmax.f32 %v73, 1e-30
    %v75 = vrsqrt.pop %v74
    %v76 = vmul.f32 %v69, %v75
    %v77 = vmul.f32 %v68, %v68
    %78 = vadd.xlane.f32.xlu0 %v77
    %v79 = vpop.xlane.xlu0 %78
    %v80 = vmax.f32 %v79, 1e-30
    %v81 = vrsqrt.pop %v80
    %v82 = vmul.f32 %v80, %v81
    %vm83 = vcmp.eq.f32.partialorder %v80, inf
    %v84 = vsel %vm83, %v80, %v82
    %vm85 = vcmp.eq.f32.partialorder %v80, 0.0
    %v86 = vand.u32 %v80, 2147483648
    %v87 = vsel %vm85, %v86, %v84
    %v88 = vrsqrt.pop %v80
    %89 = vmatprep.subr.mxu0 0.0
    %90 = vmatpush1.xpose.msra.mxu0 0.0
    %91 = vmatprep.subr.mxu0 0.0
    %92 = vmatpush1.xpose.msra.mxu0 0.0
    %93 = vmatprep.subr.mxu0 0.0
    %94 = vmatpush1.xpose.msra.mxu0 0.0
    %95 = vmatprep.subr.mxu0 0.0
    %96 = vmatpush1.xpose.msra.mxu0 0.0
    %97 = vmatprep.subr.mxu0 0.0
    %98 = vmatpush1.xpose.msra.mxu0 0.0
    %99 = vmatprep.subr.mxu0 0.0
    %100 = vmatpush1.xpose.msra.mxu0 0.0
    %101 = vmatprep.subr.mxu0 0.0
    %102 = vmatpush1.xpose.msra.mxu0 0.0
    %103 = vmatprep.subr.mxu0 0.0
    %104 = vmatpush1.xpose.msra.mxu0 0.0
    %105 = vmatprep.subr.mxu0 0.0
    %106 = vmatpush1.xpose.msra.mxu0 0.0
    %107 = vmatprep.subr.mxu0 0.0
    %108 = vmatpush1.xpose.msra.mxu0 0.0
    %109 = vmatprep.subr.mxu0 0.0
    %110 = vmatpush1.xpose.msra.mxu0 0.0
    %111 = vmatprep.subr.mxu0 0.0
    %112 = vmatpush1.xpose.msra.mxu0 0.0
    %113 = vmatprep.subr.mxu0 0.0
    %114 = vmatpush1.xpose.msra.mxu0 0.0
    %115 = vmatprep.subr.mxu0 0.0
    %116 = vmatpush1.xpose.msra.mxu0 0.0
    %117 = vmatprep.subr.mxu0 0.0
    %118 = vmatpush1.xpose.msra.mxu0 0.0
    %119 = vmatprep.subr.mxu0 0.0
    %120 = vmatpush1.xpose.msra.mxu0 %v76
    %121 = vmatprep.subr.mxu0 0.0
    %122 = vmatpush2.xpose.msra.mxu0 0.0
    %123 = vmatprep.subr.mxu0 0.0
    %124 = vmatpush2.xpose.msra.mxu0 0.0
    %125 = vmatprep.subr.mxu0 0.0
    %126 = vmatpush2.xpose.msra.mxu0 0.0
    %127 = vmatprep.subr.mxu0 0.0
    %128 = vmatpush2.xpose.msra.mxu0 0.0
    %129 = vmatprep.subr.mxu0 0.0
    %130 = vmatpush2.xpose.msra.mxu0 0.0
    %131 = vmatprep.subr.mxu0 0.0
    %132 = vmatpush2.xpose.msra.mxu0 0.0
    %133 = vmatprep.subr.mxu0 0.0
    %134 = vmatpush2.xpose.msra.mxu0 0.0
    %135 = vmatprep.subr.mxu0 0.0
    %136 = vmatpush2.xpose.msra.mxu0 0.0
    %137 = vmatprep.subr.mxu0 0.0
    %138 = vmatpush2.xpose.msra.mxu0 0.0
    %139 = vmatprep.subr.mxu0 0.0
    %140 = vmatpush2.xpose.msra.mxu0 0.0
    %141 = vmatprep.subr.mxu0 0.0
    %142 = vmatpush2.xpose.msra.mxu0 0.0
    %143 = vmatprep.subr.mxu0 0.0
    %144 = vmatpush2.xpose.msra.mxu0 0.0
    %145 = vmatprep.subr.mxu0 0.0
    %146 = vmatpush2.xpose.msra.mxu0 0.0
    %147 = vmatprep.subr.mxu0 0.0
    %148 = vmatpush2.xpose.msra.mxu0 0.0
    %149 = vmatprep.subr.mxu0 0.0
    %150 = vmatpush2.xpose.msra.mxu0 0.0
    %151 = vmatprep.subr.mxu0 0.0
    %152 = vmatpush2.xpose.msra.mxu0 0.0
    %153 = vmatprep.mubr.f32.mxu0 0.0
    %154 = vmatmul.mubr.f32.gmra.mxu0 %v68
    %v155 = vpop.f32.mrf.mxu0
    %v156 = vadd.f32 0.0, %v155
    %v157 = vpop.f32.mrf.mxu0
    %158 = vdwg.mxu0
    %v159 = vsub.f32 0.0, %v87
    %v160 = vmax.f32 %v159, %v156
    %v161 = vmin.f32 %v87, %v160
    %v162 = vmul.f32 %v161, %v88
    %v163 = vmul.f32 %v162, %v162
    %v164 = vmul.f32 %v163, 8.0
    %v165 = vmul.f32 %v164, %v163
    %v166 = vsub.f32 %v165, %v164
    %v167 = vadd.f32 %v166, 1.0
    %vm168 = vcmp.le.f32.partialorder %v162, 0.70710677
    %v169 = vsel %vm168, 1, 0
    %v170 = vcvt.s32.f32 %v169
    %vm171 = vcmp.le.f32.partialorder %v162, 0.0
    %v172 = vsel %vm171, 1, 0
    %v173 = vcvt.s32.f32 %v172
    %vm174 = vcmp.le.f32.partialorder %v162, -0.70710677
    %v175 = vsel %vm174, 1, 0
    %v176 = vcvt.s32.f32 %v175
    %v177 = vadd.f32 %v170, %v173
    %v178 = vadd.f32 %v177, %v176
    %v179 = vsub.f32 %v170, %v173
    %v180 = vadd.f32 %v179, %v176
    %v181 = vmul.f32 %v180, 2.0
    %v182 = vsub.f32 1.0, %v181
    %v183 = vmul.f32 %v182, %v167
    %v184 = vmul.f32 %v178, 2.0
    %v185 = vsub.f32 %v183, %v184
    %v186 = vmul.f32 %v185, %v87
    %v187 = vld [vmem:[%s2] sm:$0xff]
    %v188 = vld [vmem:[%s3] sm:$0x1]
    %189 = vset.pattern.permute.xlu0 0
    %190 = vperm.xlu0 %189, %v187
    %v191 = vpop.permute.xlu0 %190
    %v192 = vlaneseq
    %v193 = vshrl.u32 %v192, 7
    %v194 = vsub.s32 0, %v193
    %v195 = vrot.slane %v188, %v194
    %vm196 = vcmp.eq.s32.totalorder %v191, %v195
    %v197 = vsel %vm196, 1, 0
    %v198 = vcvt.s32.f32 %v197
    %v199 = vsub.f32 %v161, %v186
    %v200 = vstv %s70
    %v201 = vmul.f32 %v199, %v200
    %v202 = vmul.f32 %v198, %v201
    %v203 = vsub.f32 %v161, %v202
    %vm204 = vcmask 64512
    %v205 = vsel %vm204, %v203, -inf
    %v206 = vrot.slane %v205, 4
    %v207 = vmax.f32 %v205, %v206
    %v208 = vrot.slane %v207, 2
    %v209 = vmax.f32 %v207, %v208
    %v210 = vrot.slane %v209, 1
    %v211 = vmax.f32 %v209, %v210
    %v212 = vsub.f32 %v203, %v211
    %v213 = vmul.f32 %v212, 1.442695
    %v214 = vpow.pop %v213
    %v215 = vsel %vm204, %v214, 0.0
    %v216 = vrot.slane %v215, 4
    %v217 = vadd.f32 %v215, %v216
    %v218 = vrot.slane %v217, 2
    %v219 = vadd.f32 %v217, %v218
    %v220 = vrot.slane %v219, 1
    %v221 = vadd.f32 %v219, %v220
    %v222 = vlog2.pop %v221
    %v223 = vmul.f32 %v222, 0.6931472
    %v224 = vadd.f32 %v223, %v211
    %v225 = vlaneseq
    %v226 = vshrl.u32 %v225, 7
    %v227 = vlaneseq
    %v228 = vand.u32 %v227, 127
    %vm229 = vcmp.eq.s32.totalorder %v226, %v228
    %v230 = vsel %vm229, %v203, 0.0
    %v231 = vsel %vm204, %v230, 0.0
    %v232 = vrot.slane %v231, 4
    %v233 = vadd.f32 %v231, %v232
    %v234 = vrot.slane %v233, 2
    %v235 = vadd.f32 %v233, %v234
    %v236 = vrot.slane %v235, 1
    %v237 = vadd.f32 %v235, %v236
    %v238 = vsub.f32 %v237, %v224
    %v239 = vmul.f32 %v238, -1.0
    %v240 = vsel %vm204, %v239, 0.0
    %241 = vadd.xlane.f32.xlu0 %v240
    %v242 = vpop.xlane.xlu0 %241
    %v243 = vmul.f32 %v242, 0.125
    %vm244 = vcmask 0
    %245 = vst.msk [vmem:[#allocation8] sm:$0x1] %vm244, %v243
    // Predicated region
    $region44: #{tpu_custom_call.1} parent=1 // pred_check
      _
    $region45: #{tpu_custom_call.1} parent=1 // pred_check_branch
      %247 = sbr.rel (0) target = $region47
    $region46: #{tpu_custom_call.1} parent=1 // pred_region
      %s249 = ssub.s32 16, 16
      %250 = vsyncadd [#allocation6], %s249
      %s252 = sshll.u32 [#allocation8], 4
      %s253 = int_to_ptr.vmem [resolvable:$true] %s252
      %255 = dma.vmem_to_hbm [thread:$0]  %s253, 16, %s6, [#allocation6]
    $region47: #{tpu_custom_call.1} parent=1 // pred_fallthru
      _
    // Predicated region
    $region48: #{tpu_custom_call.1} parent=1 // pred_check
      _
    $region49: #{tpu_custom_call.1} parent=1 // pred_check_branch
      %257 = sbr.rel (0) target = $region51
    $region50: #{tpu_custom_call.1} parent=1 // pred_region
      %258 = dma.done [#allocation6], 16
    $region51: #{tpu_custom_call.1} parent=1 // pred_fallthru
      _
    %259 = vsyncpa [#allocation6], 1
    %260 = vsyncpa [#allocation7], 1
  %261 = vsyncmov [#allocation3]
  %s262 = vpop.sfrf %261
  %p263 = scmp.eq.s32.totalorder %s262, 0
  %p264 = pneg %p263
  %266 = shalt.err (%p264)
  %s267 = scalar_lea.sflag [#allocation3], 1
  %268 = vsyncmov %s267
  %s269 = vpop.sfrf %268
  %p270 = scmp.eq.s32.totalorder %s269, 0
  %p271 = pneg %p270
  %273 = shalt.err (%p271)
  %s274 = scalar_lea.sflag [#allocation3], 2
  %275 = vsyncmov %s274
  %s276 = vpop.sfrf %275
  %p277 = scmp.eq.s32.totalorder %s276, 0
  %p278 = pneg %p277
  %280 = shalt.err (%p278)
  %s281 = scalar_lea.sflag [#allocation3], 3
  %282 = vsyncmov %s281
  %s283 = vpop.sfrf %282
  %p284 = scmp.eq.s32.totalorder %s283, 0
  %p285 = pneg %p284
  %287 = shalt.err (%p285)
  %s288 = scalar_lea.sflag [#allocation3], 4
  %289 = vsyncmov %s288
  %s290 = vpop.sfrf %289
  %p291 = scmp.eq.s32.totalorder %s290, 0
  %p292 = pneg %p291
  %294 = shalt.err (%p292)
  %s295 = scalar_lea.sflag [#allocation3], 5
  %296 = vsyncmov %s295
  %s297 = vpop.sfrf %296
  %p298 = scmp.eq.s32.totalorder %s297, 0
  %p299 = pneg %p298
  %301 = shalt.err (%p299)
  %s302 = scalar_lea.sflag [#allocation3], 6
  %303 = vsyncmov %s302
  %s304 = vpop.sfrf %303
  %p305 = scmp.eq.s32.totalorder %s304, 0
  %p306 = pneg %p305
  %308 = shalt.err (%p306)
  %s309 = scalar_lea.sflag [#allocation3], 7
  %310 = vsyncmov %s309
  %s311 = vpop.sfrf %310
  %p312 = scmp.eq.s32.totalorder %s311, 0
  %p313 = pneg %p312
  %315 = shalt.err (%p313)

</llo_original>
